<compile_context>
chip_gen: v7x
topology: tpu7x:2x2x1
jax: 0.10.0
libtpu: 0.0.40
codegen_flags: <defaults>
</compile_context>

<pallas_src>
import functools

import jax
import jax.numpy as jnp
from jax.experimental import pallas as pl
from jax.experimental.pallas import tpu as pltpu

EPS = 1e-5
_VMEM_LIMIT = 32 * 1024 * 1024   # explicit scoped-VMEM budget, safe on v5e/v6e/v7x


def _compiler_params(semantics):
    return pltpu.CompilerParams(dimension_semantics=semantics,
                                vmem_limit_bytes=_VMEM_LIMIT)


def _row_tile(nhw, target):
    """Largest multiple of 8 that divides nhw and is <= target (else nhw)."""
    t = min(target, nhw)
    for cand in range(t - t % 8, 0, -8):
        if nhw % cand == 0:
            return cand
    return nhw


# ---------------------------------------------------------------------------
# Passes 1/3/5: per-channel training-mode BN statistics, fused to (scale, shift):
#   out[0, :] = gamma * rsqrt(var + eps)
#   out[1, :] = beta - mean * gamma * rsqrt(var + eps)
# Cross-tile reduction: sum and sum-of-squares accumulated in the resident
# output block (grid axis "arbitrary"), finalized on the last tile.
# ---------------------------------------------------------------------------
def _bn_stats_kernel(x_ref, g_ref, b_ref, o_ref, *, count):
    i = pl.program_id(0)

    @pl.when(i == 0)
    def _():
        o_ref[...] = jnp.zeros_like(o_ref)

    x = x_ref[...].astype(jnp.float32)
    o_ref[0:1, :] += jnp.sum(x, axis=0, keepdims=True)
    o_ref[1:2, :] += jnp.sum(x * x, axis=0, keepdims=True)

    @pl.when(i == pl.num_programs(0) - 1)
    def _():
        inv_n = 1.0 / count
        mu = o_ref[0:1, :] * inv_n
        var = jnp.maximum(o_ref[1:2, :] * inv_n - mu * mu, 0.0)  # guard cancellation
        scale = g_ref[...] * jax.lax.rsqrt(var + EPS)
        o_ref[0:1, :] = scale
        o_ref[1:2, :] = b_ref[...] - mu * scale


def _bn_stats(a, gamma, beta, tm):
    nhw, c = a.shape
    kernel = functools.partial(_bn_stats_kernel, count=float(nhw))
    return pl.pallas_call(
        kernel,
        out_shape=jax.ShapeDtypeStruct((2, c), jnp.float32),
        grid=(nhw // tm,),
        in_specs=[pl.BlockSpec((tm, c), lambda i: (i, 0)),
                  pl.BlockSpec((1, c), lambda i: (0, 0)),
                  pl.BlockSpec((1, c), lambda i: (0, 0))],
        out_specs=pl.BlockSpec((2, c), lambda i: (0, 0)),
        compiler_params=_compiler_params(("arbitrary",)),
    )(a, gamma, beta)


# ---------------------------------------------------------------------------
# Pass 2: BN-apply + ReLU + 1x1 conv (channel matmul), row-tiled, parallel grid.
# ---------------------------------------------------------------------------
def _bn_act_matmul_kernel(x_ref, ss_ref, w_ref, o_ref):
    a = jnp.maximum(x_ref[...].astype(jnp.float32) * ss_ref[0:1, :] + ss_ref[1:2, :],
                    0.0)
    o_ref[...] = jnp.dot(a.astype(w_ref.dtype), w_ref[...],
                         preferred_element_type=jnp.float32).astype(o_ref.dtype)


def _bn_act_matmul(a, ss, wgt, tm):
    nhw, c = a.shape
    c_out = wgt.shape[1]
    return pl.pallas_call(
        _bn_act_matmul_kernel,
        out_shape=jax.ShapeDtypeStruct((nhw, c_out), jnp.float32),
        grid=(nhw // tm,),
        in_specs=[pl.BlockSpec((tm, c), lambda i: (i, 0)),
                  pl.BlockSpec((2, c), lambda i: (0, 0)),
                  pl.BlockSpec(wgt.shape, lambda i: (0, 0))],
        out_specs=pl.BlockSpec((tm, c_out), lambda i: (i, 0)),
        compiler_params=_compiler_params(("parallel",)),
    )(a, ss, wgt)


# ---------------------------------------------------------------------------
# Pass 4: BN-apply + ReLU + 3x3 conv (stride 1, pad 1) per image.
# The activated plane is staged into a spatially padded (H+2, W+2, C) VMEM
# buffer: only the halo is zeroed, every tap is a plain slice (no where-masks,
# no iota/div/mod), the 3 dx-shifted slabs are loaded once and reused across
# dy, and the whole conv is a single im2col matmul with K = 9*C.
# ---------------------------------------------------------------------------
def _bn_act_conv3x3_kernel(a_ref, ss_ref, w_ref, o_ref, pad_ref, *, h, w):
    c = a_ref.shape[-1]
    a = jnp.maximum(a_ref[0].astype(jnp.float32) * ss_ref[0:1, :] + ss_ref[1:2, :],
                    0.0)

    # zero only the 1-pixel halo, then write the interior
    pad_ref[0, :, :] = jnp.zeros((w + 2, c), jnp.float32)
    pad_ref[h + 1, :, :] = jnp.zeros((w + 2, c), jnp.float32)
    pad_ref[1:h + 1, 0:1, :] = jnp.zeros((h, 1, c), jnp.float32)
    pad_ref[1:h + 1, w + 1:w + 2, :] = jnp.zeros((h, 1, c), jnp.float32)
    pad_ref[1:h + 1, 1:w + 1, :] = a.reshape(h, w, c)

    # im2col: 3 dx-shifted slabs, each reused for the 3 dy offsets
    slabs = [pad_ref[:, kx:kx + w, :] for kx in range(3)]            # (h+2, w, c)
    taps = [slabs[kx][ky:ky + h] for ky in range(3) for kx in range(3)]
    im2col = jnp.concatenate(taps, axis=-1).reshape(h * w, 9 * c)    # (h*w, 9c)

    o_ref[0] = jnp.dot(im2col.astype(w_ref.dtype), w_ref[...],
                       preferred_element_type=jnp.float32).astype(o_ref.dtype)


def _bn_act_conv3x3(a1, ss, w2_im2col, n, h, w):
    nhw, c = a1.shape
    a1_img = a1.reshape(n, h * w, c)
    kernel = functools.partial(_bn_act_conv3x3_kernel, h=h, w=w)
    out = pl.pallas_call(
        kernel,
        out_shape=jax.ShapeDtypeStruct((n, h * w, c), jnp.float32),
        grid=(n,),
        in_specs=[pl.BlockSpec((1, h * w, c), lambda i: (i, 0, 0)),
                  pl.BlockSpec((2, c), lambda i: (0, 0)),
                  pl.BlockSpec((9 * c, c), lambda i: (0, 0))],
        out_specs=pl.BlockSpec((1, h * w, c), lambda i: (i, 0, 0)),
        scratch_shapes=[pltpu.VMEM((h + 2, w + 2, c), jnp.float32)],
        compiler_params=_compiler_params(("parallel",)),
    )(a1_img, ss, w2_im2col)
    return out.reshape(nhw, c)


# ---------------------------------------------------------------------------
# Pass 6: BN-apply + ReLU + 1x1 conv + residual/shortcut, row-tiled, parallel.
# x is (re-)fetched only here so it is never live across the other passes.
# ---------------------------------------------------------------------------
def _bn_act_matmul_residual_kernel(a_ref, ss_ref, w_ref, x_ref, ws_ref, o_ref,
                                   *, has_shortcut):
    a = jnp.maximum(a_ref[...].astype(jnp.float32) * ss_ref[0:1, :] + ss_ref[1:2, :],
                    0.0)
    y = jnp.dot(a.astype(w_ref.dtype), w_ref[...],
                preferred_element_type=jnp.float32)
    x = x_ref[...].astype(jnp.float32)
    if has_shortcut:
        y = y + jnp.dot(x.astype(ws_ref.dtype), ws_ref[...],
                        preferred_element_type=jnp.float32)
    else:
        y = y + x
    o_ref[...] = y.astype(o_ref.dtype)


def _bn_act_matmul_residual(a3, ss, w3, x2d, ws, has_shortcut, tm):
    nhw, c_mid = a3.shape
    c_in = x2d.shape[1]
    c_out = w3.shape[1]
    kernel = functools.partial(_bn_act_matmul_residual_kernel,
                               has_shortcut=has_shortcut)
    return pl.pallas_call(
        kernel,
        out_shape=jax.ShapeDtypeStruct((nhw, c_out), jnp.float32),
        grid=(nhw // tm,),
        in_specs=[pl.BlockSpec((tm, c_mid), lambda i: (i, 0)),
                  pl.BlockSpec((2, c_mid), lambda i: (0, 0)),
                  pl.BlockSpec(w3.shape, lambda i: (0, 0)),
                  pl.BlockSpec((tm, c_in), lambda i: (i, 0)),
                  pl.BlockSpec(ws.shape, lambda i: (0, 0))],
        out_specs=pl.BlockSpec((tm, c_out), lambda i: (i, 0)),
        compiler_params=_compiler_params(("parallel",)),
    )(a3, ss, w3, x2d, ws)


# ---------------------------------------------------------------------------
# Wrapper: PreBottleNeck forward (training-mode BN), NCHW in / NCHW out.
# ---------------------------------------------------------------------------
def pre_bottleneck(x_nchw, params, stride=1, *, matmul_dtype=jnp.bfloat16,
                   row_tile=1024):
    assert stride == 1, "TODO(synk): stride>1 not implemented in the kernels"
    n, c_in, h, w = x_nchw.shape
    c_mid = params["w1"].shape[1]
    c_out = params["w3"].shape[1]
    has_shortcut = (stride != 1) or (c_in != c_out)
    nhw = n * h * w
    tm = _row_tile(nhw, row_tile)

    # layout: NCHW -> NHWC -> (N*H*W, C) pixel rows, channels on lanes
    x2d = jnp.transpose(x_nchw, (0, 2, 3, 1)).reshape(nhw, c_in)

    # weights: pre-cast once to the matmul-operand dtype (bf16 on v6e/v7x)
    w1 = params["w1"].astype(matmul_dtype)
    w2 = params["w2"].reshape(9 * c_mid, c_mid).astype(matmul_dtype)  # im2col layout
    w3 = params["w3"].astype(matmul_dtype)
    if has_shortcut:
        ws = params["ws"].astype(matmul_dtype)
    else:
        ws = jnp.zeros((c_in, c_out), matmul_dtype)                    # unused

    ss1 = _bn_stats(x2d, params["g1"], params["b1"], tm)
    a1 = _bn_act_matmul(x2d, ss1, w1, tm)
    ss2 = _bn_stats(a1, params["g2"], params["b2"], tm)
    a3 = _bn_act_conv3x3(a1, ss2, w2, n, h, w)
    ss3 = _bn_stats(a3, params["g3"], params["b3"], tm)
    y2d = _bn_act_matmul_residual(a3, ss3, w3, x2d, ws, has_shortcut, tm)

    return jnp.transpose(y2d.reshape(n, h, w, c_out), (0, 3, 1, 2))


# ---------------------------------------------------------------------------
# Pure-JAX reference (training-mode BN + convs) for validation.
# ---------------------------------------------------------------------------
def reference(x_nchw, params):
    n, c_in, h, w = x_nchw.shape
    c_mid = params["w1"].shape[1]
    c_out = params["w3"].shape[1]
    x = jnp.transpose(x_nchw, (0, 2, 3, 1))                 # NHWC

    def bn_relu(a, g, b):
        mu = jnp.mean(a, axis=(0, 1, 2), keepdims=True)
        var = jnp.mean((a - mu) ** 2, axis=(0, 1, 2), keepdims=True)
        an = (a - mu) * jax.lax.rsqrt(var + EPS) * g.reshape(1, 1, 1, -1) \
             + b.reshape(1, 1, 1, -1)
        return jnp.maximum(an, 0.0)

    def conv(a, wgt, pad):
        return jax.lax.conv_general_dilated(
            a, wgt, (1, 1), pad,
            dimension_numbers=("NHWC", "HWIO", "NHWC"),
            precision=jax.lax.Precision.HIGHEST)

    hcur = bn_relu(x, params["g1"], params["b1"])
    hcur = conv(hcur, params["w1"].reshape(1, 1, c_in, c_mid), "VALID")
    hcur = bn_relu(hcur, params["g2"], params["b2"])
    hcur = conv(hcur, params["w2"].reshape(3, 3, c_mid, c_mid), ((1, 1), (1, 1)))
    hcur = bn_relu(hcur, params["g3"], params["b3"])
    hcur = conv(hcur, params["w3"].reshape(1, 1, c_mid, c_out), "VALID")
    sc = conv(x, params["ws"].reshape(1, 1, c_in, c_out), "VALID")
    return jnp.transpose(hcur + sc, (0, 3, 1, 2))


if __name__ == "__main__":
    N, Cin, H, W = 2, 4, 16, 16
    Cmid, Cout = 4, 16      # Cin != Cout -> shortcut 1x1 conv path
    stride = 1

    ks = jax.random.split(jax.random.PRNGKey(0), 12)
    x = jax.random.normal(ks[0], (N, Cin, H, W), jnp.float32)
    params = {
        "g1": (1.0 + 0.1 * jax.random.normal(ks[1], (1, Cin))).astype(jnp.float32),
        "b1": (0.1 * jax.random.normal(ks[2], (1, Cin))).astype(jnp.float32),
        "w1": (0.5 * jax.random.normal(ks[3], (Cin, Cmid))).astype(jnp.float32),
        "g2": (1.0 + 0.1 * jax.random.normal(ks[4], (1, Cmid))).astype(jnp.float32),
        "b2": (0.1 * jax.random.normal(ks[5], (1, Cmid))).astype(jnp.float32),
        "w2": (0.2 * jax.random.normal(ks[6], (9, Cmid, Cmid))).astype(jnp.float32),
        "g3": (1.0 + 0.1 * jax.random.normal(ks[7], (1, Cmid))).astype(jnp.float32),
        "b3": (0.1 * jax.random.normal(ks[8], (1, Cmid))).astype(jnp.float32),
        "w3": (0.5 * jax.random.normal(ks[9], (Cmid, Cout))).astype(jnp.float32),
        "ws": (0.5 * jax.random.normal(ks[10], (Cin, Cout))).astype(jnp.float32),
    }

    y_ref = reference(x, params)

    # strict numerical check with f32 matmul operands (row_tile=128 -> 4-step
    # grid, exercising the cross-tile BN reduction and the parallel row tiling)
    y_f32 = jax.block_until_ready(
        pre_bottleneck(x, params, stride=stride,
                       matmul_dtype=jnp.float32, row_tile=128))
    assert y_f32.shape == (N, Cout, H, W), y_f32.shape
    err_f32 = float(jnp.max(jnp.abs(y_f32 - y_ref)))
    assert err_f32 < 1e-3, f"f32 max abs error {err_f32}"

    # default path: bf16 matmul operands with f32 accumulation (v6e/v7x MXU)
    y_bf16 = jax.block_until_ready(
        pre_bottleneck(x, params, stride=stride, row_tile=128))
    assert y_bf16.shape == (N, Cout, H, W), y_bf16.shape
    scale = float(jnp.max(jnp.abs(y_ref)))
    err_bf16 = float(jnp.max(jnp.abs(y_bf16 - y_ref)))
    assert err_bf16 < 0.05 * scale + 0.05, f"bf16 max abs error {err_bf16}"

    print("KERNEL_OK")
</pallas_src>

<mosaic_0001>
module attributes {stable_mosaic.version = 11 : i64} {
  func.func @_bn_stats_kernel(%arg0: i32, %arg1: memref<128x4xf32, #tpu.memory_space<vmem>>, %arg2: memref<1x4xf32, #tpu.memory_space<vmem>>, %arg3: memref<1x4xf32, #tpu.memory_space<vmem>>, %arg4: memref<2x4xf32, #tpu.memory_space<vmem>>) attributes {dimension_semantics = [#tpu.dimension_semantics<arbitrary>], iteration_bounds = array<i64: 4>, scalar_prefetch = 0 : i64, scratch_operands = 0 : i64, tpu.core_type = #tpu.core_type<tc>, window_params = [{transform_indices = @transform_0, window_bounds = array<i64: 128, 4>}, {pipeline_mode = #tpu.pipeline_mode<synchronous>, transform_indices = @transform_1, window_bounds = array<i64: 1, 4>}, {pipeline_mode = #tpu.pipeline_mode<synchronous>, transform_indices = @transform_2, window_bounds = array<i64: 1, 4>}, {pipeline_mode = #tpu.pipeline_mode<synchronous>, transform_indices = @transform_3, window_bounds = array<i64: 2, 4>}]} {
    %c0_i32 = arith.constant 0 : i32
    %0 = arith.cmpi eq, %arg0, %c0_i32 : i32
    %1 = arith.extui %0 : i1 to i32
    %c0_i32_0 = arith.constant 0 : i32
    %2 = arith.cmpi ne, %1, %c0_i32_0 : i32
    scf.if %2 {
      %cst_11 = arith.constant 0.000000e+00 : f32
      %18 = vector.broadcast %cst_11 : f32 to vector<2x4xf32>
      %c0_12 = arith.constant 0 : index
      %c0_13 = arith.constant 0 : index
      %19 = vector.load %arg4[%c0_12, %c0_13] : memref<2x4xf32, #tpu.memory_space<vmem>>, vector<2x4xf32>
      tpu.vector_store %arg4[%c0_12, %c0_13], %18 {strides = array<i32>} : memref<2x4xf32, #tpu.memory_space<vmem>>, vector<2x4xf32>,
    } else {
    }
    %c0 = arith.constant 0 : index
    %c0_1 = arith.constant 0 : index
    %3 = vector.load %arg1[%c0, %c0_1] : memref<128x4xf32, #tpu.memory_space<vmem>>, vector<128x4xf32>
    %c0_2 = arith.constant 0 : index
    %c0_3 = arith.constant 0 : index
    %4 = vector.load %arg4[%c0_2, %c0_3] : memref<2x4xf32, #tpu.memory_space<vmem>>, vector<1x4xf32>
    %cst = arith.constant dense<0.000000e+00> : vector<4xf32>
    %5 = vector.multi_reduction <add>, %3, %cst [0] : vector<128x4xf32> to vector<4xf32>
    %6 = vector.shape_cast %5 : vector<4xf32> to vector<1x4xf32>
    %7 = arith.addf %4, %6 : vector<1x4xf32>
    %c0_4 = arith.constant 0 : index
    %c0_5 = arith.constant 0 : index
    %8 = vector.load %arg4[%c0_4, %c0_5] : memref<2x4xf32, #tpu.memory_space<vmem>>, vector<1x4xf32>
    tpu.vector_store %arg4[%c0_4, %c0_5], %7 {strides = array<i32>} : memref<2x4xf32, #tpu.memory_space<vmem>>, vector<1x4xf32>,
    %c1 = arith.constant 1 : index
    %c0_6 = arith.constant 0 : index
    %9 = vector.load %arg4[%c1, %c0_6] : memref<2x4xf32, #tpu.memory_space<vmem>>, vector<1x4xf32>
    %10 = arith.mulf %3, %3 : vector<128x4xf32>
    %cst_7 = arith.constant dense<0.000000e+00> : vector<4xf32>
    %11 = vector.multi_reduction <add>, %10, %cst_7 [0] : vector<128x4xf32> to vector<4xf32>
    %12 = vector.shape_cast %11 : vector<4xf32> to vector<1x4xf32>
    %13 = arith.addf %9, %12 : vector<1x4xf32>
    %c1_8 = arith.constant 1 : index
    %c0_9 = arith.constant 0 : index
    %14 = vector.load %arg4[%c1_8, %c0_9] : memref<2x4xf32, #tpu.memory_space<vmem>>, vector<1x4xf32>
    tpu.vector_store %arg4[%c1_8, %c0_9], %13 {strides = array<i32>} : memref<2x4xf32, #tpu.memory_space<vmem>>, vector<1x4xf32>,
    %c3_i32 = arith.constant 3 : i32
    %15 = arith.cmpi eq, %arg0, %c3_i32 : i32
    %16 = arith.extui %15 : i1 to i32
    %c0_i32_10 = arith.constant 0 : i32
    %17 = arith.cmpi ne, %16, %c0_i32_10 : i32
    scf.if %17 {
      %c0_11 = arith.constant 0 : index
      %c0_12 = arith.constant 0 : index
      %18 = vector.load %arg4[%c0_11, %c0_12] : memref<2x4xf32, #tpu.memory_space<vmem>>, vector<1x4xf32>
      %cst_13 = arith.constant 0.001953125 : f32
      %19 = vector.broadcast %cst_13 : f32 to vector<1x4xf32>
      %20 = arith.mulf %18, %19 : vector<1x4xf32>
      %c1_14 = arith.constant 1 : index
      %c0_15 = arith.constant 0 : index
      %21 = vector.load %arg4[%c1_14, %c0_15] : memref<2x4xf32, #tpu.memory_space<vmem>>, vector<1x4xf32>
      %cst_16 = arith.constant 0.001953125 : f32
      %22 = vector.broadcast %cst_16 : f32 to vector<1x4xf32>
      %23 = arith.mulf %21, %22 : vector<1x4xf32>
      %24 = arith.mulf %20, %20 : vector<1x4xf32>
      %25 = arith.subf %23, %24 : vector<1x4xf32>
      %cst_17 = arith.constant 0.000000e+00 : f32
      %26 = vector.broadcast %cst_17 : f32 to vector<1x4xf32>
      %27 = arith.maximumf %25, %26 : vector<1x4xf32>
      %c0_18 = arith.constant 0 : index
      %c0_19 = arith.constant 0 : index
      %28 = vector.load %arg2[%c0_18, %c0_19] : memref<1x4xf32, #tpu.memory_space<vmem>>, vector<1x4xf32>
      %cst_20 = arith.constant 9.99999974E-6 : f32
      %29 = vector.broadcast %cst_20 : f32 to vector<1x4xf32>
      %30 = arith.addf %27, %29 : vector<1x4xf32>
      %31 = math.rsqrt %30 : vector<1x4xf32>
      %32 = arith.mulf %28, %31 : vector<1x4xf32>
      %c0_21 = arith.constant 0 : index
      %c0_22 = arith.constant 0 : index
      %33 = vector.load %arg4[%c0_21, %c0_22] : memref<2x4xf32, #tpu.memory_space<vmem>>, vector<1x4xf32>
      tpu.vector_store %arg4[%c0_21, %c0_22], %32 {strides = array<i32>} : memref<2x4xf32, #tpu.memory_space<vmem>>, vector<1x4xf32>,
      %c0_23 = arith.constant 0 : index
      %c0_24 = arith.constant 0 : index
      %34 = vector.load %arg3[%c0_23, %c0_24] : memref<1x4xf32, #tpu.memory_space<vmem>>, vector<1x4xf32>
      %35 = arith.mulf %20, %32 : vector<1x4xf32>
      %36 = arith.subf %34, %35 : vector<1x4xf32>
      %c1_25 = arith.constant 1 : index
      %c0_26 = arith.constant 0 : index
      %37 = vector.load %arg4[%c1_25, %c0_26] : memref<2x4xf32, #tpu.memory_space<vmem>>, vector<1x4xf32>
      tpu.vector_store %arg4[%c1_25, %c0_26], %36 {strides = array<i32>} : memref<2x4xf32, #tpu.memory_space<vmem>>, vector<1x4xf32>,
    } else {
    }
    return
  }
  func.func @transform_0(%arg0: i32) -> (i32, i32) {
    %c0_i32 = arith.constant 0 : i32
    %c0_i32_0 = arith.constant 0 : i32
    return %arg0, %c0_i32 : i32, i32
  }
  func.func @transform_1(%arg0: i32) -> (i32, i32) {
    %c0_i32 = arith.constant 0 : i32
    %c0_i32_0 = arith.constant 0 : i32
    %c0_i32_1 = arith.constant 0 : i32
    return %c0_i32, %c0_i32_0 : i32, i32
  }
  func.func @transform_2(%arg0: i32) -> (i32, i32) {
    %c0_i32 = arith.constant 0 : i32
    %c0_i32_0 = arith.constant 0 : i32
    %c0_i32_1 = arith.constant 0 : i32
    return %c0_i32, %c0_i32_0 : i32, i32
  }
  func.func @transform_3(%arg0: i32) -> (i32, i32) {
    %c0_i32 = arith.constant 0 : i32
    %c0_i32_0 = arith.constant 0 : i32
    %c0_i32_1 = arith.constant 0 : i32
    return %c0_i32, %c0_i32_0 : i32, i32
  }
}

</mosaic_0001>

<llo_original>
// kernel: tpu_custom_call.1
$region0: #{tpu_custom_call.1}
  #allocation0 [shape = 'u32[]', space=smem, size = 0x4, offset = 0x4, fixed_abs, tag = 'smem constant byte address 0x4 - core index']
  #allocation1 [shape = 'u32[144,128]{1,0:T(1,128)}', space=vmem, size = 0x12000, scoped, tag = 'internal scratch']
  %s0 = inlined_call_operand.vmem [shape: f32[512,4], index: 0, kind: input, shape index: {}]
  %s1 = inlined_call_operand.vmem [shape: f32[1,4], index: 1, kind: input, shape index: {}]
  %s2 = inlined_call_operand.vmem [shape: f32[1,4], index: 2, kind: input, shape index: {}]
  %s3 = inlined_call_operand.hbm [shape: f32[2,4], index: 3, kind: output, shape index: {}]
  %s4 = sld [smem:[#allocation0]]
  $region53: #{tpu_custom_call.1} parent=0
    _
  %s6 = ssub.s32 1, %s4
  %s7 = scalar_select 0, %s6, %s4
  $region1: #{tpu_custom_call.1} parent=0
    #allocation2 [shape = 'u8[1024]{0}', space=vmem, size = 0x400, scoped, tag = 'output window, operand 0, single buffered']
    #allocation3 [shape = 's32[2]{0}', space=sflag, size = 0x8, scoped, tag = 'scoped memory for tpu_custom_call.1']
    %8 = vsyncpa [#allocation3], 0
    loop: start=0, step=1, limit=6
    $region2: #{tpu_custom_call.1} parent=1 // loop_pre_header
      _
    $region3: #{tpu_custom_call.1} parent=1 // loop_header
      %s10 = sphi 0, %s14
      %p11 = scmp.ge.s32.totalorder %s10, 6
      %s20 = sphi 0, %s22
      %s23 = sphi 0, %s20
      %s24 = sphi 0, %s23
      %s40 = sphi 0, %s24
      %s44 = sphi 0, %s44
      %s46 = sphi 0, %s44
      %s47 = sphi 0, %s46
      %s61 = sphi 0, %s47
      %s65 = sphi 0, %s65
      %s67 = sphi 0, %s65
      %s68 = sphi 0, %s67
      %s82 = sphi 0, %s68
      %s86 = sphi 0, %s86
      %s88 = sphi 0, %s86
      %s89 = sphi 0, %s88
      %s103 = sphi 0, %s89
    $region4: #{tpu_custom_call.1} parent=1 // loop_header_branch
      %13 = sbr.rel (%p11) target = $region8
    $region5: #{tpu_custom_call.1} parent=1 // loop_body
      %s15 = ssub.s32 %s10, 1
      %s16 = ssub.s32 %s10, 2
      %s17 = sadd.s32 %s10, 1
      %s18 = ssub.s32 %s10, %s17
      %p19 = scmp.eq.s32.totalorder %s18, 0
      %s21 = sadd.s32 %s20, 1
      %s22 = scalar_select %p19, %s20, %s21
      %p25 = pneg %p19
      %p26 = scmp.eq.s32.totalorder %s10, 3
      %p27 = por %p25, %p26
      %p28 = scmp.ne.s32.totalorder %s20, %s23
      %p29 = scmp.eq.s32.totalorder %s10, 0
      %p30 = por %p28, %p29
      %p31 = scmp.ne.s32.totalorder %s20, %s23
      %p32 = scmp.eq.s32.totalorder %s15, 3
      %p33 = por %p31, %p32
      %p34 = scmp.ne.s32.totalorder %s23, %s24
      %p35 = scmp.eq.s32.totalorder %s15, 0
      %p36 = por %p34, %p35
      %p37 = scmp.ne.s32.totalorder %s23, %s24
      %p38 = scmp.eq.s32.totalorder %s16, 3
      %p39 = por %p37, %p38
      %p41 = scmp.ne.s32.totalorder %s24, %s40
      %p42 = scmp.eq.s32.totalorder %s16, 0
      %p43 = por %p41, %p42
      %s45 = sadd.s32 %s44, 1
      %p48 = scmp.eq.s32.totalorder %s10, 3
      %p49 = scmp.ne.s32.totalorder %s44, %s46
      %p50 = scmp.eq.s32.totalorder %s10, 0
      %p51 = por %p49, %p50
      %p52 = scmp.ne.s32.totalorder %s44, %s46
      %p53 = scmp.eq.s32.totalorder %s15, 3
      %p54 = por %p52, %p53
      %p55 = scmp.ne.s32.totalorder %s46, %s47
      %p56 = scmp.eq.s32.totalorder %s15, 0
      %p57 = por %p55, %p56
      %p58 = scmp.ne.s32.totalorder %s46, %s47
      %p59 = scmp.eq.s32.totalorder %s16, 3
      %p60 = por %p58, %p59
      %p62 = scmp.ne.s32.totalorder %s47, %s61
      %p63 = scmp.eq.s32.totalorder %s16, 0
      %p64 = por %p62, %p63
      %s66 = sadd.s32 %s65, 1
      %p69 = scmp.eq.s32.totalorder %s10, 3
      %p70 = scmp.ne.s32.totalorder %s65, %s67
      %p71 = scmp.eq.s32.totalorder %s10, 0
      %p72 = por %p70, %p71
      %p73 = scmp.ne.s32.totalorder %s65, %s67
      %p74 = scmp.eq.s32.totalorder %s15, 3
      %p75 = por %p73, %p74
      %p76 = scmp.ne.s32.totalorder %s67, %s68
      %p77 = scmp.eq.s32.totalorder %s15, 0
      %p78 = por %p76, %p77
      %p79 = scmp.ne.s32.totalorder %s67, %s68
      %p80 = scmp.eq.s32.totalorder %s16, 3
      %p81 = por %p79, %p80
      %p83 = scmp.ne.s32.totalorder %s68, %s82
      %p84 = scmp.eq.s32.totalorder %s16, 0
      %p85 = por %p83, %p84
      %s87 = sadd.s32 %s86, 1
      %p90 = scmp.eq.s32.totalorder %s10, 3
      %p91 = scmp.ne.s32.totalorder %s86, %s88
      %p92 = scmp.eq.s32.totalorder %s10, 0
      %p93 = por %p91, %p92
      %p94 = scmp.ne.s32.totalorder %s86, %s88
      %p95 = scmp.eq.s32.totalorder %s15, 3
      %p96 = por %p94, %p95
      %p97 = scmp.ne.s32.totalorder %s88, %s89
      %p98 = scmp.eq.s32.totalorder %s15, 0
      %p99 = por %p97, %p98
      %p100 = scmp.ne.s32.totalorder %s88, %s89
      %p101 = scmp.eq.s32.totalorder %s16, 3
      %p102 = por %p100, %p101
      %p104 = scmp.ne.s32.totalorder %s89, %s103
      %p105 = scmp.eq.s32.totalorder %s16, 0
      %p106 = por %p104, %p105
      %p107 = scmp.le.s32.totalorder 1, %s10
      %p108 = scmp.lt.s32.totalorder %s10, 5
      %p109 = pnand %p107, %p108
      %p110 = pneg %p109
      // Predicated region
      $region9: #{tpu_custom_call.1} parent=5 // pred_check
        _
      $region10: #{tpu_custom_call.1} parent=5 // pred_check_branch
        %112 = sbr.rel (%p109) target = $region12
      $region11: #{tpu_custom_call.1} parent=5 // pred_region
        %s113 = ssub.s32 %s10, 1
        // Predicated region
        $region13: #{tpu_custom_call.1} parent=11 // pred_check
          %p114 = pneg %p57
        $region14: #{tpu_custom_call.1} parent=11 // pred_check_branch
          %116 = sbr.rel (%p114) target = $region16
        $region15: #{tpu_custom_call.1} parent=11 // pred_region
          _
        $region16: #{tpu_custom_call.1} parent=11 // pred_fallthru
          _
        // Predicated region
        $region17: #{tpu_custom_call.1} parent=11 // pred_check
          %p117 = pneg %p78
        $region18: #{tpu_custom_call.1} parent=11 // pred_check_branch
          %119 = sbr.rel (%p117) target = $region20
        $region19: #{tpu_custom_call.1} parent=11 // pred_region
          _
        $region20: #{tpu_custom_call.1} parent=11 // pred_fallthru
          _
      $region12: #{tpu_custom_call.1} parent=5 // pred_fallthru
        _
      %p120 = scmp.lt.s32.totalorder %s10, 4
      // Predicated region
      $region21: #{tpu_custom_call.1} parent=5 // pred_check
        %p121 = pneg %p120
      $region22: #{tpu_custom_call.1} parent=5 // pred_check_branch
        %123 = sbr.rel (%p121) target = $region24
      $region23: #{tpu_custom_call.1} parent=5 // pred_region
        // Predicated region
        $region25: #{tpu_custom_call.1} parent=23 // pred_check
          %p124 = pneg %p30
        $region26: #{tpu_custom_call.1} parent=23 // pred_check_branch
          %126 = sbr.rel (%p124) target = $region28
        $region27: #{tpu_custom_call.1} parent=23 // pred_region
          %s127 = smul.u32 16, %s10
          %p128 = scmp.lt.s32.totalorder %s127, 63
          %s129 = scalar_select %p128, %s127, 63
          %s130 = smul.addr %s129, 8
          %s131 = scalar_lea.vmem %s0, %s130
          %s132 = smul.u32 16, %s10
        $region28: #{tpu_custom_call.1} parent=23 // pred_fallthru
          _
      $region24: #{tpu_custom_call.1} parent=5 // pred_fallthru
        _
      %p133 = scmp.le.s32.totalorder 1, %s10
      %p134 = scmp.lt.s32.totalorder %s10, 5
      %p135 = pnand %p133, %p134
      %p136 = pneg %p135
      // Predicated region
      $region29: #{tpu_custom_call.1} parent=5 // pred_check
        _
      $region30: #{tpu_custom_call.1} parent=5 // pred_check_branch
        %138 = sbr.rel (%p135) target = $region32
      $region31: #{tpu_custom_call.1} parent=5 // pred_region
        %s139 = ssub.s32 %s10, 1
        %s140 = smul.u32 16, %s15
        %p141 = scmp.lt.s32.totalorder %s140, 63
        %s142 = scalar_select %p141, %s140, 63
        %s143 = smul.addr %s142, 8
        %s144 = scalar_lea.vmem %s0, %s143
        %p145 = pneg %p36
        %p146 = pneg %p33
        %p147 = pneg %p57
        %p148 = pneg %p54
        %p149 = pneg %p78
        %p150 = pneg %p75
        %p151 = pneg %p99
        %p152 = pneg %p96
        %s153 = smul.u32 16, %s15
        %p154 = scmp.lt.s32.totalorder %s153, 63
        %s155 = scalar_select %p154, %s153, 63
        %s156 = smul.addr %s155, 8
        %s157 = scalar_lea.vmem %s0, %s156
        %s158 = smul.u32 16, %s15
        %p159 = scmp.eq.s32.totalorder %s15, 0
        // Predicated region
        $region33: #{tpu_custom_call.1} parent=31 // pred_check
          %p160 = pneg %p159
        $region34: #{tpu_custom_call.1} parent=31 // pred_check_branch
          %162 = sbr.rel (%p160) target = $region36
        $region35: #{tpu_custom_call.1} parent=31 // pred_region
          %vm163 = vcmask 25600
          %164 = vst.msk [vmem:[#allocation2] sm:$0x3] %vm163, 0.0
        $region36: #{tpu_custom_call.1} parent=31 // pred_fallthru
          _
        %v165 = vld [vmem:[%s157] sm:$0xff]
        %v166 = vld [vmem:[%s157 + $0x8] sm:$0xff]
        %v167 = vld [vmem:[%s157 + $0x10] sm:$0xff]
        %v168 = vld [vmem:[%s157 + $0x18] sm:$0xff]
        %v169 = vld [vmem:[%s157 + $0x20] sm:$0xff]
        %v170 = vld [vmem:[%s157 + $0x28] sm:$0xff]
        %v171 = vld [vmem:[%s157 + $0x30] sm:$0xff]
        %v172 = vld [vmem:[%s157 + $0x38] sm:$0xff]
        %v173 = vld [vmem:[%s157 + $0x40] sm:$0xff]
        %v174 = vld [vmem:[%s157 + $0x48] sm:$0xff]
        %v175 = vld [vmem:[%s157 + $0x50] sm:$0xff]
        %v176 = vld [vmem:[%s157 + $0x58] sm:$0xff]
        %v177 = vld [vmem:[%s157 + $0x60] sm:$0xff]
        %v178 = vld [vmem:[%s157 + $0x68] sm:$0xff]
        %v179 = vld [vmem:[%s157 + $0x70] sm:$0xff]
        %v180 = vld [vmem:[%s157 + $0x78] sm:$0xff]
        %v181 = vld [vmem:[#allocation2] sm:$0x1]
        %vm182 = vcmask 31744
        %v183 = vsel %vm182, %v165, 0.0
        %v184 = vsel %vm182, %v166, 0.0
        %v185 = vadd.f32 %v183, %v184
        %v186 = vsel %vm182, %v167, 0.0
        %v187 = vadd.f32 %v185, %v186
        %v188 = vsel %vm182, %v168, 0.0
        %v189 = vadd.f32 %v187, %v188
        %v190 = vsel %vm182, %v169, 0.0
        %v191 = vadd.f32 %v189, %v190
        %v192 = vsel %vm182, %v170, 0.0
        %v193 = vadd.f32 %v191, %v192
        %v194 = vsel %vm182, %v171, 0.0
        %v195 = vadd.f32 %v193, %v194
        %v196 = vsel %vm182, %v172, 0.0
        %v197 = vadd.f32 %v195, %v196
        %v198 = vsel %vm182, %v173, 0.0
        %v199 = vadd.f32 %v197, %v198
        %v200 = vsel %vm182, %v174, 0.0
        %v201 = vadd.f32 %v199, %v200
        %v202 = vsel %vm182, %v175, 0.0
        %v203 = vadd.f32 %v201, %v202
        %v204 = vsel %vm182, %v176, 0.0
        %v205 = vadd.f32 %v203, %v204
        %v206 = vsel %vm182, %v177, 0.0
        %v207 = vadd.f32 %v205, %v206
        %v208 = vsel %vm182, %v178, 0.0
        %v209 = vadd.f32 %v207, %v208
        %v210 = vsel %vm182, %v179, 0.0
        %v211 = vadd.f32 %v209, %v210
        %v212 = vsel %vm182, %v180, 0.0
        %v213 = vadd.f32 %v211, %v212
        %v214 = vrot.slane %v213, 4
        %v215 = vadd.f32 %v213, %v214
        %v216 = vrot.slane %v215, 2
        %v217 = vadd.f32 %v215, %v216
        %v218 = vrot.slane %v217, 1
        %v219 = vadd.f32 %v217, %v218
        %v220 = vadd.f32 %v181, %v219
        %vm221 = vcmask 24576
        %222 = vst.msk [vmem:[#allocation2] sm:$0x1] %vm221, %v220
        %v223 = vld [vmem:[#allocation2 + $0x1] sm:$0x1]
        %v224 = vmul.f32 %v165, %v165
        %v225 = vmul.f32 %v166, %v166
        %v226 = vmul.f32 %v167, %v167
        %v227 = vmul.f32 %v168, %v168
        %v228 = vmul.f32 %v169, %v169
        %v229 = vmul.f32 %v170, %v170
        %v230 = vmul.f32 %v171, %v171
        %v231 = vmul.f32 %v172, %v172
        %v232 = vmul.f32 %v173, %v173
        %v233 = vmul.f32 %v174, %v174
        %v234 = vmul.f32 %v175, %v175
        %v235 = vmul.f32 %v176, %v176
        %v236 = vmul.f32 %v177, %v177
        %v237 = vmul.f32 %v178, %v178
        %v238 = vmul.f32 %v179, %v179
        %v239 = vmul.f32 %v180, %v180
        %v240 = vsel %vm182, %v224, 0.0
        %v241 = vsel %vm182, %v225, 0.0
        %v242 = vadd.f32 %v240, %v241
        %v243 = vsel %vm182, %v226, 0.0
        %v244 = vadd.f32 %v242, %v243
        %v245 = vsel %vm182, %v227, 0.0
        %v246 = vadd.f32 %v244, %v245
        %v247 = vsel %vm182, %v228, 0.0
        %v248 = vadd.f32 %v246, %v247
        %v249 = vsel %vm182, %v229, 0.0
        %v250 = vadd.f32 %v248, %v249
        %v251 = vsel %vm182, %v230, 0.0
        %v252 = vadd.f32 %v250, %v251
        %v253 = vsel %vm182, %v231, 0.0
        %v254 = vadd.f32 %v252, %v253
        %v255 = vsel %vm182, %v232, 0.0
        %v256 = vadd.f32 %v254, %v255
        %v257 = vsel %vm182, %v233, 0.0
        %v258 = vadd.f32 %v256, %v257
        %v259 = vsel %vm182, %v234, 0.0
        %v260 = vadd.f32 %v258, %v259
        %v261 = vsel %vm182, %v235, 0.0
        %v262 = vadd.f32 %v260, %v261
        %v263 = vsel %vm182, %v236, 0.0
        %v264 = vadd.f32 %v262, %v263
        %v265 = vsel %vm182, %v237, 0.0
        %v266 = vadd.f32 %v264, %v265
        %v267 = vsel %vm182, %v238, 0.0
        %v268 = vadd.f32 %v266, %v267
        %v269 = vsel %vm182, %v239, 0.0
        %v270 = vadd.f32 %v268, %v269
        %v271 = vrot.slane %v270, 4
        %v272 = vadd.f32 %v270, %v271
        %v273 = vrot.slane %v272, 2
        %v274 = vadd.f32 %v272, %v273
        %v275 = vrot.slane %v274, 1
        %v276 = vadd.f32 %v274, %v275
        %v277 = vadd.f32 %v223, %v276
        %278 = vst.msk [vmem:[#allocation2 + $0x1] sm:$0x1] %vm221, %v277
        %p279 = scmp.eq.s32.totalorder %s15, 3
        // Predicated region
        $region37: #{tpu_custom_call.1} parent=31 // pred_check
          %p280 = pneg %p279
        $region38: #{tpu_custom_call.1} parent=31 // pred_check_branch
          %282 = sbr.rel (%p280) target = $region40
        $region39: #{tpu_custom_call.1} parent=31 // pred_region
          %v283 = vld [vmem:[#allocation2] sm:$0x1]
          %v284 = vmul.f32 %v283, 0.001953125
          %v285 = vld [vmem:[#allocation2 + $0x1] sm:$0x1]
          %v286 = vmul.f32 %v285, 0.001953125
          %v287 = vmul.f32 %v284, %v284
          %v288 = vsub.f32 %v286, %v287
          %v289 = vmax.f32 %v288, 0.0
          %v290 = vld [vmem:[%s1] sm:$0x1]
          %v291 = vadd.f32 %v289, 1e-05
          %v292 = vrsqrt.pop %v291
          %v293 = vmul.f32 %v290, %v292
          %294 = vst.msk [vmem:[#allocation2] sm:$0x1] %vm221, %v293
          %v295 = vld [vmem:[%s2] sm:$0x1]
          %v296 = vmul.f32 %v284, %v293
          %v297 = vsub.f32 %v295, %v296
          %298 = vst.msk [vmem:[#allocation2 + $0x1] sm:$0x1] %vm221, %v297
        $region40: #{tpu_custom_call.1} parent=31 // pred_fallthru
          _
        // Predicated region
        $region41: #{tpu_custom_call.1} parent=31 // pred_check
          %p299 = pneg %p96
        $region42: #{tpu_custom_call.1} parent=31 // pred_check_branch
          %301 = sbr.rel (%p299) target = $region44
        $region43: #{tpu_custom_call.1} parent=31 // pred_region
          %s303 = ssub.s32 32, 32
          %304 = vsyncadd [#allocation3], %s303
          %s306 = sshll.u32 [#allocation2], 4
          %s307 = int_to_ptr.vmem [resolvable:$true] %s306
          %309 = dma.vmem_to_hbm [thread:$0]  %s307, 32, %s3, [#allocation3]
        $region44: #{tpu_custom_call.1} parent=31 // pred_fallthru
          _
        // Predicated region
        $region45: #{tpu_custom_call.1} parent=31 // pred_check
          %p310 = pneg %p96
        $region46: #{tpu_custom_call.1} parent=31 // pred_check_branch
          %312 = sbr.rel (%p310) target = $region48
        $region47: #{tpu_custom_call.1} parent=31 // pred_region
          %313 = dma.done [#allocation3], 32
        $region48: #{tpu_custom_call.1} parent=31 // pred_fallthru
          _
      $region32: #{tpu_custom_call.1} parent=5 // pred_fallthru
        _
      %p314 = scmp.le.s32.totalorder 2, %s10
      // Predicated region
      $region49: #{tpu_custom_call.1} parent=5 // pred_check
        %p315 = pneg %p314
      $region50: #{tpu_custom_call.1} parent=5 // pred_check_branch
        %317 = sbr.rel (%p315) target = $region52
      $region51: #{tpu_custom_call.1} parent=5 // pred_region
        %s318 = ssub.s32 %s10, 2
      $region52: #{tpu_custom_call.1} parent=5 // pred_fallthru
        _
    $region6: #{tpu_custom_call.1} parent=1 // loop_footer
      %s14 = sadd.s32 1, %s10
    $region7: #{tpu_custom_call.1} parent=1 // loop_footer_branch
      %9 = sbr.rel target = $region3
    $region8: #{tpu_custom_call.1} parent=1 // loop_exit
      _
    %319 = vsyncpa [#allocation3], 1
    %s320 = scalar_lea.sflag [#allocation3], 1
    %321 = vsyncpa %s320, 1

</llo_original>
